<compile_context>
chip_gen: v5e
topology: v5e:2x2
jax: 0.10.0
libtpu: 0.0.40
codegen_flags: <defaults>
</compile_context>

<pallas_src>
import numpy as np
import jax
import jax.numpy as jnp
from jax.experimental import pallas as pl
from jax.experimental.pallas import tpu as pltpu


# ---------------------------------------------------------------------------
# Fast path: indices are statically arange(L)  ->  one contiguous slab copy.
# ---------------------------------------------------------------------------
def _slab_copy_kernel(emb_hbm, out_ref, copy_sem):
    # emb_hbm : (V, H) embedding table, left in HBM (memory_space=pl.ANY).
    # out_ref : (L, H) full output block in VMEM.
    # One DMA moves rows [0, L) straight into the output block; no vst needed.
    L = out_ref.shape[0]
    src = emb_hbm if L == emb_hbm.shape[0] else emb_hbm.at[pl.ds(0, L), :]
    cp = pltpu.make_async_copy(src, out_ref, copy_sem)
    cp.start()
    cp.wait()


def _prompt_embeds_contiguous(embedding_weight, prompt_len):
    V, H = embedding_weight.shape
    L = int(prompt_len)
    assert L <= V
    itemsize = np.dtype(embedding_weight.dtype).itemsize
    return pl.pallas_call(
        _slab_copy_kernel,
        out_shape=jax.ShapeDtypeStruct((L, H), embedding_weight.dtype),
        in_specs=[pl.BlockSpec(memory_space=pl.ANY)],          # table stays in HBM
        out_specs=pl.BlockSpec(memory_space=pltpu.MemorySpace.VMEM),
        scratch_shapes=[pltpu.SemaphoreType.DMA(())],
        cost_estimate=pl.CostEstimate(
            flops=0, transcendentals=0, bytes_accessed=2 * L * H * itemsize),
    )(embedding_weight)


# ---------------------------------------------------------------------------
# General path: arbitrary (in-range) indices  ->  amortized manual DMA gather.
# ---------------------------------------------------------------------------
def _gather_rows_kernel(idx_ref, emb_hbm, out_ref, stage_ref, row_sems):
    # idx_ref  : (L,) int32 in SMEM.
    # emb_hbm  : (V, H) table in HBM.
    # out_ref  : (L, H) output block in VMEM.
    # stage_ref: (L, H) VMEM staging buffer.
    # row_sems : (L,) DMA semaphores, one per in-flight row copy.
    L = out_ref.shape[0]
    V = emb_hbm.shape[0]
    copies = []
    for r in range(L):                          # static unroll; L is small
        row = jnp.clip(idx_ref[r], 0, V - 1)    # never DMA outside the table
        cp = pltpu.make_async_copy(
            emb_hbm.at[pl.ds(row, 1), :],
            stage_ref.at[pl.ds(r, 1), :],
            row_sems.at[r],
        )
        cp.start()                              # keep all L row fetches in flight
        copies.append(cp)
    for cp in copies:
        cp.wait()
    out_ref[...] = stage_ref[...]               # one dense (L, H) store


def _prompt_embeds_gather(seq_indices, embedding_weight):
    (L,) = seq_indices.shape
    V, H = embedding_weight.shape
    itemsize = np.dtype(embedding_weight.dtype).itemsize
    return pl.pallas_call(
        _gather_rows_kernel,
        out_shape=jax.ShapeDtypeStruct((L, H), embedding_weight.dtype),
        in_specs=[
            pl.BlockSpec(memory_space=pltpu.MemorySpace.SMEM),  # indices (scalars)
            pl.BlockSpec(memory_space=pl.ANY),                  # table in HBM
        ],
        out_specs=pl.BlockSpec(memory_space=pltpu.MemorySpace.VMEM),
        scratch_shapes=[
            pltpu.VMEM((L, H), embedding_weight.dtype),
            pltpu.SemaphoreType.DMA((L,)),
        ],
        cost_estimate=pl.CostEstimate(
            flops=0, transcendentals=0, bytes_accessed=2 * L * H * itemsize),
    )(seq_indices.astype(jnp.int32), embedding_weight)


def _is_static_arange(idx):
    """True iff idx is a concrete 1-D integer array equal to arange(len(idx))."""
    try:
        host = np.asarray(idx)
    except Exception:                           # traced value -> can't specialize
        return False
    return (host.ndim == 1 and host.dtype.kind in "iu"
            and np.array_equal(host, np.arange(host.shape[0])))


def prompt_encoder_forward(seq_indices, embedding_weight):
    """Equivalent of PromptEncoder.forward(device): embedding(seq_indices)."""
    if _is_static_arange(seq_indices):
        # The module's fixed arange(L) indices: pure contiguous slab copy.
        return _prompt_embeds_contiguous(embedding_weight, seq_indices.shape[0])
    # Fallback for truly arbitrary indices.
    return _prompt_embeds_gather(seq_indices, embedding_weight)


if __name__ == "__main__":
    soft_prompt_len = 8
    hidden_size = 32

    key = jax.random.PRNGKey(0)
    # nn.Embedding default init ~ N(0, 1); deterministic synthetic weights.
    embedding_weight = jax.random.normal(
        key, (soft_prompt_len, hidden_size), dtype=jnp.float32)
    # self.seq_indices = LongTensor(range(soft_prompt_len))
    seq_indices = jnp.arange(soft_prompt_len, dtype=jnp.int32)

    # Module's actual forward: fast contiguous-slab path.
    out = prompt_encoder_forward(seq_indices, embedding_weight)
    out = jax.block_until_ready(out)
    ref = jnp.take(embedding_weight, seq_indices, axis=0)
    assert out.shape == (soft_prompt_len, hidden_size)
    assert out.dtype == jnp.float32
    assert jnp.allclose(out, ref, atol=1e-6), "contiguous path != reference"

    # Fallback path (arbitrary indices), exercised for correctness coverage.
    shuffled = seq_indices[::-1]
    out_g = jax.block_until_ready(
        prompt_encoder_forward(shuffled, embedding_weight))
    ref_g = jnp.take(embedding_weight, shuffled, axis=0)
    assert jnp.allclose(out_g, ref_g, atol=1e-6), "gather path != reference"

    print("KERNEL_OK")
</pallas_src>

<mosaic_0001>
module attributes {stable_mosaic.version = 11 : i64} {
  func.func @_slab_copy_kernel(%arg0: memref<8x32xf32, #tpu.memory_space<any>>, %arg1: memref<8x32xf32, #tpu.memory_space<vmem>>, %arg2: memref<!tpu.dma_semaphore, #tpu.memory_space<semaphore_mem>>) attributes {dimension_semantics = [], scalar_prefetch = 0 : i64, scratch_operands = 1 : i64, tpu.core_type = #tpu.core_type<tc>} {
    tpu.enqueue_dma source(%arg0 : memref<8x32xf32, #tpu.memory_space<any>>) target(%arg1 : memref<8x32xf32, #tpu.memory_space<vmem>>) target_semaphore(%arg2 : memref<!tpu.dma_semaphore, #tpu.memory_space<semaphore_mem>>)
    tpu.wait_dma2 semaphore(%arg2 : memref<!tpu.dma_semaphore, #tpu.memory_space<semaphore_mem>>) src(%arg0 : memref<8x32xf32, #tpu.memory_space<any>>) dst(%arg1 : memref<8x32xf32, #tpu.memory_space<vmem>>)
    return
  }
}

</mosaic_0001>

<llo_original>
// kernel: tpu_custom_call.1
$region0: #{tpu_custom_call.1}
  #allocation0 [shape = 'u32[]', space=smem, size = 0x4, offset = 0x4, fixed_abs, tag = 'smem constant byte address 0x4 - core index']
  #allocation1 [shape = 'u32[72,128]{1,0:T(1,128)}', space=vmem, size = 0x9000, scoped, tag = 'internal scratch']
  #allocation2 [shape = 's32[1]{0}', space=sflag, size = 0x4, scoped, tag = 'scratch operand']
  #allocation5 [shape = 's32[]', space=sflag, size = 0x4, offset = 0, fixed_abs, tag = 'sflag constant byte address 0x0 - dummy sync flag']
  #allocation6 [shape = 's32[]', space=sflag, size = 0x4, offset = 0, fixed_abs, tag = 'sflag constant byte address 0x0 - dummy sync flag']
  #allocation7 [shape = 'u32[]', space=smem, size = 0x4, offset = 0x44, fixed_abs, tag = 'smem constant byte address 0x44 - assertion arg 0']
  #allocation8 [shape = 'u32[]', space=smem, size = 0x4, offset = 0x48, fixed_abs, tag = 'smem constant byte address 0x48 - assertion arg 1']
  %s0 = inlined_call_operand.hbm [shape: f32[8,32], index: 0, kind: input, shape index: {}]
  %s1 = inlined_call_operand.hbm [shape: f32[8,32], index: 1, kind: output, shape index: {}]
  %s2 = sld [smem:[#allocation0]]
  $region14: #{tpu_custom_call.1} parent=0
    _
  %s4 = ssub.s32 1, %s2
  %s5 = scalar_select 0, %s4, %s2
  $region1: #{tpu_custom_call.1} parent=0
    #allocation3 [shape = 'u8[4096]{0}', space=vmem, size = 0x1000, scoped, tag = 'output window, operand 0, single buffered']
    #allocation4 [shape = 's32[1]{0}', space=sflag, size = 0x4, scoped, tag = 'scoped memory for tpu_custom_call.1']
    %6 = vsyncpa [#allocation4], 0
    // Predicated region
    $region2: #{tpu_custom_call.1} parent=1 // pred_check
      _
    $region3: #{tpu_custom_call.1} parent=1 // pred_check_branch
      %8 = sbr.rel target = $region5
    $region4: #{tpu_custom_call.1} parent=1 // pred_region
      %9 = sst [smem:[#allocation7]] [#allocation6]
      %10 = sst [smem:[#allocation8]] [#allocation5]
    $region5: #{tpu_custom_call.1} parent=1 // pred_fallthru
      _
    %12 = shalt.err (0)
    %s14 = sshll.u32 %s0, 4
    %s15 = int_to_ptr.hbm [resolvable:$true] %s14
    %s16 = sshll.u32 [#allocation3], 4
    %s17 = int_to_ptr.vmem [resolvable:$true] %s16
    %19 = dma.hbm_to_vmem [thread:$0]  %s15, 128, %s17, [#allocation2]
    %s20 = smul.u32 8, 1
    %s21 = sshll.u32 %s20, 4
    %22 = dma.done [#allocation2], %s21
    // Predicated region
    $region6: #{tpu_custom_call.1} parent=1 // pred_check
      _
    $region7: #{tpu_custom_call.1} parent=1 // pred_check_branch
      %24 = sbr.rel (0) target = $region9
    $region8: #{tpu_custom_call.1} parent=1 // pred_region
      %26 = vsyncadd [#allocation4], 0
      %s28 = sshll.u32 [#allocation3], 4
      %s29 = int_to_ptr.vmem [resolvable:$true] %s28
      %s30 = sshll.u32 %s1, 4
      %s31 = int_to_ptr.hbm [resolvable:$true] %s30
      %33 = dma.vmem_to_hbm [thread:$0]  %s29, 128, %s31, [#allocation4]
    $region9: #{tpu_custom_call.1} parent=1 // pred_fallthru
      _
    // Predicated region
    $region10: #{tpu_custom_call.1} parent=1 // pred_check
      _
    $region11: #{tpu_custom_call.1} parent=1 // pred_check_branch
      %35 = sbr.rel (0) target = $region13
    $region12: #{tpu_custom_call.1} parent=1 // pred_region
      %37 = dma.done [#allocation4], 128
    $region13: #{tpu_custom_call.1} parent=1 // pred_fallthru
      _
    %38 = vsyncpa [#allocation4], 1
  %39 = vsyncmov [#allocation2]
  %s40 = vpop.sfrf %39
  %p41 = scmp.eq.s32.totalorder %s40, 0
  %p42 = pneg %p41
  %44 = shalt.err (%p42)

</llo_original>
